<compile_context>
chip_gen: v5e
topology: v5e:2x2
jax: 0.10.0
libtpu: 0.0.40
codegen_flags: <defaults>
</compile_context>

<pallas_src>
import functools
import math

import jax
import jax.numpy as jnp
from jax.experimental import pallas as pl
from jax.experimental.pallas import tpu as pltpu

IN_DIM = 3
HIDDEN = 128
OUT_DIM = 1                      # per head; heads fused to 2 rows (mu, std)

_HALF_LOG_2PI = 0.5 * math.log(2.0 * math.pi)


def _policy_kernel(xe_ref, w1_ref, b1_ref, wh_ref, bh_ref, out_ref, *, head_bf16):
    # Single fused lane-dense input slab: rows 0..2 = x, row 3 = eps.
    xe = xe_ref[...]                               # (4, TB)  f32
    eps = xe[3:4, :]                               # (1, TB)

    # fc1 + relu as 3 broadcast FMAs on the VPU (K=3 would waste the MXU and
    # force a layout shuffle of the lane-sparse input).  Kept in f32 so the
    # same kernel runs on v5e (no bf16 VPU) without emulation.
    w1 = w1_ref[...]                               # (128, 3) torch layout
    h = (b1_ref[...]                               # (128, 1) -> lane broadcast
         + w1[:, 0:1] * xe[0:1, :]
         + w1[:, 1:2] * xe[1:2, :]
         + w1[:, 2:3] * xe[2:3, :])                # (128, TB)
    h = jnp.maximum(h, 0.0)

    # Fused mu/std heads: single (2,128) @ (128,TB) MXU matmul, fused bias.
    # Optional bf16 operands (v6e/v7x): halves the h vector-store traffic and
    # the MXU weight push; accumulation stays f32 via preferred_element_type.
    wh = wh_ref[...]                               # (2, 128)
    if head_bf16:
        h = h.astype(jnp.bfloat16)
        wh = wh.astype(jnp.bfloat16)
    mz = jnp.dot(wh, h, preferred_element_type=jnp.float32) + bh_ref[...]
    mu = mz[0:1, :]                                # (1, TB)
    z = mz[1:2, :]                                 # (1, TB)

    # softplus (numerically stable): max(z,0) + log1p(exp(-|z|))
    std = jnp.maximum(z, 0.0) + jnp.log1p(jnp.exp(-jnp.abs(z)))

    # Reparameterized sample; (action - mu)/std == eps by construction, so the
    # Normal log_prob needs no reciprocal / re-derived z-score.
    action = mu + std * eps
    t = jnp.tanh(action)
    omt2 = 1.0 - t * t + 1e-7                      # parity with torch reference

    # Stack the two independent logs into one EUP pass over a (2, TB) operand
    # instead of two 1/8-sublane-utilized (1, TB) calls.
    logs = jnp.log(jnp.concatenate([std, omt2], axis=0))     # (2, TB)
    real_log_prob = (-0.5 * eps * eps - logs[0:1, :] - _HALF_LOG_2PI
                     - logs[1:2, :])

    # Direct lane-dense sub-row stores (skip the sublane-concat copy).
    out_ref[0:1, :] = t
    out_ref[1:2, :] = real_log_prob


def _round_up(x, m):
    return ((x + m - 1) // m) * m


def policy_net_forward(x, params, eps, *, max_tile=4096, head_bf16=False):
    """x: (B, 3) f32 state, eps: (B, 1) f32 standard-normal rsample noise.
    Returns (real_action, real_log_prob), each (B, 1) f32."""
    B = x.shape[0]
    w1, b1, wh, bh = params

    # One fused, lane-dense input slab [x; eps] -> (4, B): a single DMA stream
    # and a single double-buffered VMEM block instead of two.
    # TODO(synk): callers that can hand over the (4, B) slab directly (or let
    # the kernel draw eps via pltpu.prng_seed/prng_random_bits) also skip this
    # wrapper-side concat+transpose, which dominates wall time at tiny B.
    xe_t = jnp.concatenate([x, eps], axis=1).T     # (4, B)

    # Tile sizing:
    #  * B <= 128: one full-array block (no lane-divisibility constraint).
    #  * otherwise: lane-dense tiles sized so there are at least 2 grid steps
    #    (the "parallel" batch axis then shards across both v7x TensorCores),
    #    capped at max_tile so single-TC v5e/v6e amortize per-step overhead.
    # No jnp.pad: Pallas pads partial-block reads and masks the final writes.
    if B <= 128:
        tb = B
    else:
        tb = min(max_tile, _round_up(pl.cdiv(B, 2), 128))
    grid = pl.cdiv(B, tb)

    cost = pl.CostEstimate(
        flops=2 * B * (IN_DIM * HIDDEN + HIDDEN * 2),
        transcendentals=5 * B,
        bytes_accessed=(4 + 2) * 4 * B
        + 4 * (HIDDEN * IN_DIM + HIDDEN + 2 * HIDDEN + 2),
    )

    out = pl.pallas_call(
        functools.partial(_policy_kernel, head_bf16=head_bf16),
        out_shape=jax.ShapeDtypeStruct((2, B), jnp.float32),
        grid=(grid,),
        in_specs=[
            pl.BlockSpec((4, tb), lambda i: (0, i)),            # [x; eps] slab
            pl.BlockSpec((HIDDEN, IN_DIM), lambda i: (0, 0)),   # w1  (resident)
            pl.BlockSpec((HIDDEN, 1), lambda i: (0, 0)),        # b1  (resident)
            pl.BlockSpec((2, HIDDEN), lambda i: (0, 0)),        # fused head weight
            pl.BlockSpec((2, 1), lambda i: (0, 0)),             # fused head bias
        ],
        out_specs=pl.BlockSpec((2, tb), lambda i: (0, i)),
        compiler_params=pltpu.CompilerParams(
            dimension_semantics=("parallel",)),                 # megacore on v7x
        cost_estimate=cost,
    )(xe_t, w1, b1, wh, bh)

    real_action = out[0, :].reshape(B, OUT_DIM)
    real_log_prob = out[1, :].reshape(B, OUT_DIM)
    return real_action, real_log_prob


def init_params(key):
    """nn.Linear-style U(-1/sqrt(fan_in), +1/sqrt(fan_in)) init, torch layout
    (out_features, in_features); mu/std heads fused into (2,128)/(2,1)."""
    k1, k2, k3, k4, k5, k6 = jax.random.split(key, 6)
    lim1 = 1.0 / math.sqrt(IN_DIM)
    lim2 = 1.0 / math.sqrt(HIDDEN)
    w1 = jax.random.uniform(k1, (HIDDEN, IN_DIM), jnp.float32, -lim1, lim1)
    b1 = jax.random.uniform(k2, (HIDDEN, 1), jnp.float32, -lim1, lim1)
    wmu = jax.random.uniform(k3, (OUT_DIM, HIDDEN), jnp.float32, -lim2, lim2)
    bmu = jax.random.uniform(k4, (OUT_DIM, 1), jnp.float32, -lim2, lim2)
    wstd = jax.random.uniform(k5, (OUT_DIM, HIDDEN), jnp.float32, -lim2, lim2)
    bstd = jax.random.uniform(k6, (OUT_DIM, 1), jnp.float32, -lim2, lim2)
    wh = jnp.concatenate([wmu, wstd], axis=0)      # (2, 128)
    bh = jnp.concatenate([bmu, bstd], axis=0)      # (2, 1)
    return (w1, b1, wh, bh)


def _reference(x, params, eps):
    """Pure-JAX reference matching the PyTorch forward."""
    w1, b1, wh, bh = params
    h = jax.nn.relu(x @ w1.T + b1[:, 0])           # (B, 128)
    mz = h @ wh.T + bh[:, 0]                       # (B, 2)
    mu = mz[:, 0:1]
    std = jax.nn.softplus(mz[:, 1:2])
    action = mu + std * eps
    log_prob = (-0.5 * ((action - mu) / std) ** 2
                - jnp.log(std) - 0.5 * jnp.log(2.0 * jnp.pi))
    t = jnp.tanh(action)
    return t, log_prob - jnp.log(1.0 - t * t + 1e-7)


if __name__ == "__main__":
    key = jax.random.PRNGKey(0)
    k_param, k_x, k_eps = jax.random.split(key, 3)
    params = init_params(k_param)

    # Small batch: single full-array block.
    B = 8
    x = jax.random.normal(k_x, (B, IN_DIM), jnp.float32)
    eps = jax.random.normal(k_eps, (B, OUT_DIM), jnp.float32)   # rsample noise
    act, logp = policy_net_forward(x, params, eps)
    jax.block_until_ready((act, logp))
    ref_a, ref_lp = _reference(x, params, eps)
    assert jnp.allclose(act, ref_a, atol=2e-5, rtol=1e-5)
    assert jnp.allclose(logp, ref_lp, atol=5e-4, rtol=1e-4)

    # Larger ragged batch: 2 grid steps (v7x megacore path) + masked partial
    # final block (no wrapper-side padding).
    B2 = 300
    x2 = jax.random.normal(jax.random.fold_in(k_x, 1), (B2, IN_DIM), jnp.float32)
    eps2 = jax.random.normal(jax.random.fold_in(k_eps, 1), (B2, OUT_DIM), jnp.float32)
    act2, logp2 = policy_net_forward(x2, params, eps2)
    jax.block_until_ready((act2, logp2))
    ref_a2, ref_lp2 = _reference(x2, params, eps2)
    assert jnp.allclose(act2, ref_a2, atol=2e-5, rtol=1e-5)
    assert jnp.allclose(logp2, ref_lp2, atol=5e-4, rtol=1e-4)

    # Opt-in bf16 head path (v6e/v7x fast path); tolerances are looser by
    # construction of bf16.
    act3, logp3 = policy_net_forward(x2, params, eps2, head_bf16=True)
    jax.block_until_ready((act3, logp3))
    assert bool(jnp.all(jnp.isfinite(act3))) and bool(jnp.all(jnp.isfinite(logp3)))
    assert jnp.allclose(act3, ref_a2, atol=1e-1, rtol=0.0)
    assert jnp.allclose(logp3, ref_lp2, atol=5e-1, rtol=0.0)

    print("KERNEL_OK")
</pallas_src>

<mosaic_0001>
module attributes {stable_mosaic.version = 11 : i64} {
  func.func @_policy_kernel(%arg0: i32, %arg1: memref<4x8xf32, #tpu.memory_space<vmem>>, %arg2: memref<128x3xf32, #tpu.memory_space<vmem>>, %arg3: memref<128x1xf32, #tpu.memory_space<vmem>>, %arg4: memref<2x128xf32, #tpu.memory_space<vmem>>, %arg5: memref<2x1xf32, #tpu.memory_space<vmem>>, %arg6: memref<2x8xf32, #tpu.memory_space<vmem>>) attributes {dimension_semantics = [#tpu.dimension_semantics<parallel>], iteration_bounds = array<i64: 1>, scalar_prefetch = 0 : i64, scratch_operands = 0 : i64, tpu.core_type = #tpu.core_type<tc>, window_params = [{transform_indices = @transform_0, window_bounds = array<i64: 4, 8>}, {pipeline_mode = #tpu.pipeline_mode<synchronous>, transform_indices = @transform_1, window_bounds = array<i64: 128, 3>}, {pipeline_mode = #tpu.pipeline_mode<synchronous>, transform_indices = @transform_2, window_bounds = array<i64: 128, 1>}, {pipeline_mode = #tpu.pipeline_mode<synchronous>, transform_indices = @transform_3, window_bounds = array<i64: 2, 128>}, {pipeline_mode = #tpu.pipeline_mode<synchronous>, transform_indices = @transform_4, window_bounds = array<i64: 2, 1>}, {transform_indices = @transform_5, window_bounds = array<i64: 2, 8>}]} {
    %c0 = arith.constant 0 : index
    %c0_0 = arith.constant 0 : index
    %0 = vector.load %arg1[%c0, %c0_0] : memref<4x8xf32, #tpu.memory_space<vmem>>, vector<4x8xf32>
    %1 = vector.extract_strided_slice %0 {offsets = [3, 0], sizes = [1, 8], strides = [1, 1]} : vector<4x8xf32> to vector<1x8xf32>
    %c0_1 = arith.constant 0 : index
    %c0_2 = arith.constant 0 : index
    %2 = vector.load %arg2[%c0_1, %c0_2] : memref<128x3xf32, #tpu.memory_space<vmem>>, vector<128x3xf32>
    %c0_3 = arith.constant 0 : index
    %c0_4 = arith.constant 0 : index
    %3 = vector.load %arg3[%c0_3, %c0_4] : memref<128x1xf32, #tpu.memory_space<vmem>>, vector<128x1xf32>
    %4 = vector.extract_strided_slice %2 {offsets = [0, 0], sizes = [128, 1], strides = [1, 1]} : vector<128x3xf32> to vector<128x1xf32>
    %5 = vector.extract_strided_slice %0 {offsets = [0, 0], sizes = [1, 8], strides = [1, 1]} : vector<4x8xf32> to vector<1x8xf32>
    %6 = vector.broadcast %4 : vector<128x1xf32> to vector<128x8xf32>
    %7 = vector.broadcast %5 : vector<1x8xf32> to vector<128x8xf32>
    %8 = arith.mulf %6, %7 : vector<128x8xf32>
    %9 = vector.broadcast %3 : vector<128x1xf32> to vector<128x8xf32>
    %10 = arith.addf %9, %8 : vector<128x8xf32>
    %11 = vector.extract_strided_slice %2 {offsets = [0, 1], sizes = [128, 1], strides = [1, 1]} : vector<128x3xf32> to vector<128x1xf32>
    %12 = vector.extract_strided_slice %0 {offsets = [1, 0], sizes = [1, 8], strides = [1, 1]} : vector<4x8xf32> to vector<1x8xf32>
    %13 = vector.broadcast %11 : vector<128x1xf32> to vector<128x8xf32>
    %14 = vector.broadcast %12 : vector<1x8xf32> to vector<128x8xf32>
    %15 = arith.mulf %13, %14 : vector<128x8xf32>
    %16 = arith.addf %10, %15 : vector<128x8xf32>
    %17 = vector.extract_strided_slice %2 {offsets = [0, 2], sizes = [128, 1], strides = [1, 1]} : vector<128x3xf32> to vector<128x1xf32>
    %18 = vector.extract_strided_slice %0 {offsets = [2, 0], sizes = [1, 8], strides = [1, 1]} : vector<4x8xf32> to vector<1x8xf32>
    %19 = vector.broadcast %17 : vector<128x1xf32> to vector<128x8xf32>
    %20 = vector.broadcast %18 : vector<1x8xf32> to vector<128x8xf32>
    %21 = arith.mulf %19, %20 : vector<128x8xf32>
    %22 = arith.addf %16, %21 : vector<128x8xf32>
    %cst = arith.constant 0.000000e+00 : f32
    %23 = vector.broadcast %cst : f32 to vector<128x8xf32>
    %24 = arith.maximumf %22, %23 : vector<128x8xf32>
    %c0_5 = arith.constant 0 : index
    %c0_6 = arith.constant 0 : index
    %25 = vector.load %arg4[%c0_5, %c0_6] : memref<2x128xf32, #tpu.memory_space<vmem>>, vector<2x128xf32>
    %cst_7 = arith.constant dense<0.000000e+00> : vector<2x8xf32>
    %26 = tpu.matmul %25, %24, %cst_7 {dimension_numbers = #tpu.dot_dimension_numbers<[1], [0], [0], [1], [0, 0, 1, 1], [], []>} : vector<2x128xf32>, vector<128x8xf32>, vector<2x8xf32> -> vector<2x8xf32>
    %c0_8 = arith.constant 0 : index
    %c0_9 = arith.constant 0 : index
    %27 = vector.load %arg5[%c0_8, %c0_9] : memref<2x1xf32, #tpu.memory_space<vmem>>, vector<2x1xf32>
    %28 = vector.broadcast %27 : vector<2x1xf32> to vector<2x8xf32>
    %29 = arith.addf %26, %28 : vector<2x8xf32>
    %30 = vector.extract_strided_slice %29 {offsets = [0, 0], sizes = [1, 8], strides = [1, 1]} : vector<2x8xf32> to vector<1x8xf32>
    %31 = vector.extract_strided_slice %29 {offsets = [1, 0], sizes = [1, 8], strides = [1, 1]} : vector<2x8xf32> to vector<1x8xf32>
    %cst_10 = arith.constant 0.000000e+00 : f32
    %32 = vector.broadcast %cst_10 : f32 to vector<1x8xf32>
    %33 = arith.maximumf %31, %32 : vector<1x8xf32>
    %34 = math.absf %31 : vector<1x8xf32>
    %cst_11 = arith.constant 0.000000e+00 : f32
    %35 = vector.broadcast %cst_11 : f32 to vector<1x8xf32>
    %36 = arith.subf %35, %34 : vector<1x8xf32>
    %37 = math.exp %36 : vector<1x8xf32>
    %38 = math.log1p %37 : vector<1x8xf32>
    %39 = arith.addf %33, %38 : vector<1x8xf32>
    %40 = arith.mulf %39, %1 : vector<1x8xf32>
    %41 = arith.addf %30, %40 : vector<1x8xf32>
    %42 = math.tanh %41 : vector<1x8xf32>
    %43 = arith.mulf %42, %42 : vector<1x8xf32>
    %cst_12 = arith.constant 1.000000e+00 : f32
    %44 = vector.broadcast %cst_12 : f32 to vector<1x8xf32>
    %45 = arith.subf %44, %43 : vector<1x8xf32>
    %cst_13 = arith.constant 1.000000e-07 : f32
    %46 = vector.broadcast %cst_13 : f32 to vector<1x8xf32>
    %47 = arith.addf %45, %46 : vector<1x8xf32>
    %48 = tpu.concatenate %39, %47 in 0 : vector<1x8xf32>, vector<1x8xf32> -> vector<2x8xf32>
    %49 = math.log %48 : vector<2x8xf32>
    %cst_14 = arith.constant -5.000000e-01 : f32
    %50 = vector.broadcast %cst_14 : f32 to vector<1x8xf32>
    %51 = arith.mulf %50, %1 : vector<1x8xf32>
    %52 = arith.mulf %51, %1 : vector<1x8xf32>
    %53 = vector.extract_strided_slice %49 {offsets = [0, 0], sizes = [1, 8], strides = [1, 1]} : vector<2x8xf32> to vector<1x8xf32>
    %54 = arith.subf %52, %53 : vector<1x8xf32>
    %cst_15 = arith.constant 0.918938517 : f32
    %55 = vector.broadcast %cst_15 : f32 to vector<1x8xf32>
    %56 = arith.subf %54, %55 : vector<1x8xf32>
    %57 = vector.extract_strided_slice %49 {offsets = [1, 0], sizes = [1, 8], strides = [1, 1]} : vector<2x8xf32> to vector<1x8xf32>
    %58 = arith.subf %56, %57 : vector<1x8xf32>
    %c0_16 = arith.constant 0 : index
    %c0_17 = arith.constant 0 : index
    %59 = vector.load %arg6[%c0_16, %c0_17] : memref<2x8xf32, #tpu.memory_space<vmem>>, vector<1x8xf32>
    tpu.vector_store %arg6[%c0_16, %c0_17], %42 {strides = array<i32>} : memref<2x8xf32, #tpu.memory_space<vmem>>, vector<1x8xf32>,
    %c1 = arith.constant 1 : index
    %c0_18 = arith.constant 0 : index
    %60 = vector.load %arg6[%c1, %c0_18] : memref<2x8xf32, #tpu.memory_space<vmem>>, vector<1x8xf32>
    tpu.vector_store %arg6[%c1, %c0_18], %58 {strides = array<i32>} : memref<2x8xf32, #tpu.memory_space<vmem>>, vector<1x8xf32>,
    return
  }
  func.func @transform_0(%arg0: i32) -> (i32, i32) {
    %c0_i32 = arith.constant 0 : i32
    %c0_i32_0 = arith.constant 0 : i32
    return %c0_i32, %arg0 : i32, i32
  }
  func.func @transform_1(%arg0: i32) -> (i32, i32) {
    %c0_i32 = arith.constant 0 : i32
    %c0_i32_0 = arith.constant 0 : i32
    %c0_i32_1 = arith.constant 0 : i32
    return %c0_i32, %c0_i32_0 : i32, i32
  }
  func.func @transform_2(%arg0: i32) -> (i32, i32) {
    %c0_i32 = arith.constant 0 : i32
    %c0_i32_0 = arith.constant 0 : i32
    %c0_i32_1 = arith.constant 0 : i32
    return %c0_i32, %c0_i32_0 : i32, i32
  }
  func.func @transform_3(%arg0: i32) -> (i32, i32) {
    %c0_i32 = arith.constant 0 : i32
    %c0_i32_0 = arith.constant 0 : i32
    %c0_i32_1 = arith.constant 0 : i32
    return %c0_i32, %c0_i32_0 : i32, i32
  }
  func.func @transform_4(%arg0: i32) -> (i32, i32) {
    %c0_i32 = arith.constant 0 : i32
    %c0_i32_0 = arith.constant 0 : i32
    %c0_i32_1 = arith.constant 0 : i32
    return %c0_i32, %c0_i32_0 : i32, i32
  }
  func.func @transform_5(%arg0: i32) -> (i32, i32) {
    %c0_i32 = arith.constant 0 : i32
    %c0_i32_0 = arith.constant 0 : i32
    return %c0_i32, %arg0 : i32, i32
  }
}

</mosaic_0001>

<llo_original>
// kernel: tpu_custom_call.1
$region0: #{tpu_custom_call.1}
  #allocation0 [shape = 'u32[]', space=smem, size = 0x4, offset = 0x4, fixed_abs, tag = 'smem constant byte address 0x4 - core index']
  #allocation1 [shape = 'u32[72,128]{1,0:T(1,128)}', space=vmem, size = 0x9000, scoped, tag = 'internal scratch']
  %s0 = inlined_call_operand.vmem [shape: f32[4,8], index: 0, kind: input, shape index: {}]
  %s1 = inlined_call_operand.vmem [shape: f32[128,3], index: 1, kind: input, shape index: {}]
  %s2 = inlined_call_operand.vmem [shape: f32[128,1], index: 2, kind: input, shape index: {}]
  %s3 = inlined_call_operand.vmem [shape: f32[2,128], index: 3, kind: input, shape index: {}]
  %s4 = inlined_call_operand.vmem [shape: f32[2,1], index: 4, kind: input, shape index: {}]
  %s5 = inlined_call_operand.hbm [shape: f32[2,8], index: 5, kind: output, shape index: {}]
  %s6 = sld [smem:[#allocation0]]
  $region30: #{tpu_custom_call.1} parent=0
    _
  %s8 = ssub.s32 1, %s6
  %s9 = scalar_select 0, %s8, %s6
  $region1: #{tpu_custom_call.1} parent=0
    #allocation2 [shape = 'u8[1024]{0}', space=vmem, size = 0x400, scoped, tag = 'output window, operand 0, single buffered']
    #allocation3 [shape = 's32[1]{0}', space=sflag, size = 0x4, scoped, tag = 'scoped memory for tpu_custom_call.1']
    %10 = vsyncpa [#allocation3], 0
    // Predicated region
    $region2: #{tpu_custom_call.1} parent=1 // pred_check
      _
    $region3: #{tpu_custom_call.1} parent=1 // pred_check_branch
      %12 = sbr.rel (0) target = $region5
    $region4: #{tpu_custom_call.1} parent=1 // pred_region
      _
    $region5: #{tpu_custom_call.1} parent=1 // pred_fallthru
      _
    // Predicated region
    $region6: #{tpu_custom_call.1} parent=1 // pred_check
      _
    $region7: #{tpu_custom_call.1} parent=1 // pred_check_branch
      %14 = sbr.rel (0) target = $region9
    $region8: #{tpu_custom_call.1} parent=1 // pred_region
      _
    $region9: #{tpu_custom_call.1} parent=1 // pred_fallthru
      _
    // Predicated region
    $region10: #{tpu_custom_call.1} parent=1 // pred_check
      _
    $region11: #{tpu_custom_call.1} parent=1 // pred_check_branch
      %16 = sbr.rel (0) target = $region13
    $region12: #{tpu_custom_call.1} parent=1 // pred_region
      _
    $region13: #{tpu_custom_call.1} parent=1 // pred_fallthru
      _
    // Predicated region
    $region14: #{tpu_custom_call.1} parent=1 // pred_check
      _
    $region15: #{tpu_custom_call.1} parent=1 // pred_check_branch
      %18 = sbr.rel (0) target = $region17
    $region16: #{tpu_custom_call.1} parent=1 // pred_region
      _
    $region17: #{tpu_custom_call.1} parent=1 // pred_fallthru
      _
    // Predicated region
    $region18: #{tpu_custom_call.1} parent=1 // pred_check
      _
    $region19: #{tpu_custom_call.1} parent=1 // pred_check_branch
      %20 = sbr.rel (0) target = $region21
    $region20: #{tpu_custom_call.1} parent=1 // pred_region
      _
    $region21: #{tpu_custom_call.1} parent=1 // pred_fallthru
      _
    %v21 = vld [vmem:[%s0] sm:$0xf]
    %v22 = vld [vmem:[%s1] sm:$0xff]
    %v23 = vld [vmem:[%s1 + $0x8] sm:$0xff]
    %v24 = vld [vmem:[%s1 + $0x10] sm:$0xff]
    %v25 = vld [vmem:[%s1 + $0x18] sm:$0xff]
    %v26 = vld [vmem:[%s1 + $0x20] sm:$0xff]
    %v27 = vld [vmem:[%s1 + $0x28] sm:$0xff]
    %v28 = vld [vmem:[%s1 + $0x30] sm:$0xff]
    %v29 = vld [vmem:[%s1 + $0x38] sm:$0xff]
    %v30 = vld [vmem:[%s1 + $0x40] sm:$0xff]
    %v31 = vld [vmem:[%s1 + $0x48] sm:$0xff]
    %v32 = vld [vmem:[%s1 + $0x50] sm:$0xff]
    %v33 = vld [vmem:[%s1 + $0x58] sm:$0xff]
    %v34 = vld [vmem:[%s1 + $0x60] sm:$0xff]
    %v35 = vld [vmem:[%s1 + $0x68] sm:$0xff]
    %v36 = vld [vmem:[%s1 + $0x70] sm:$0xff]
    %v37 = vld [vmem:[%s1 + $0x78] sm:$0xff]
    %v38 = vld [vmem:[%s2] sm:$0xff]
    %v39 = vld [vmem:[%s2 + $0x8] sm:$0xff]
    %v40 = vld [vmem:[%s2 + $0x10] sm:$0xff]
    %v41 = vld [vmem:[%s2 + $0x18] sm:$0xff]
    %v42 = vld [vmem:[%s2 + $0x20] sm:$0xff]
    %v43 = vld [vmem:[%s2 + $0x28] sm:$0xff]
    %v44 = vld [vmem:[%s2 + $0x30] sm:$0xff]
    %v45 = vld [vmem:[%s2 + $0x38] sm:$0xff]
    %v46 = vld [vmem:[%s2 + $0x40] sm:$0xff]
    %v47 = vld [vmem:[%s2 + $0x48] sm:$0xff]
    %v48 = vld [vmem:[%s2 + $0x50] sm:$0xff]
    %v49 = vld [vmem:[%s2 + $0x58] sm:$0xff]
    %v50 = vld [vmem:[%s2 + $0x60] sm:$0xff]
    %v51 = vld [vmem:[%s2 + $0x68] sm:$0xff]
    %v52 = vld [vmem:[%s2 + $0x70] sm:$0xff]
    %v53 = vld [vmem:[%s2 + $0x78] sm:$0xff]
    %55 = vset.pattern.permute.xlu0 0
    %56 = vperm.xlu0 %55, %v22
    %v57 = vpop.permute.xlu0 %56
    %60 = vset.pattern.permute.xlu0 0
    %61 = vperm.xlu0 %60, %v23
    %v62 = vpop.permute.xlu0 %61
    %65 = vset.pattern.permute.xlu0 0
    %66 = vperm.xlu0 %65, %v24
    %v67 = vpop.permute.xlu0 %66
    %70 = vset.pattern.permute.xlu0 0
    %71 = vperm.xlu0 %70, %v25
    %v72 = vpop.permute.xlu0 %71
    %75 = vset.pattern.permute.xlu0 0
    %76 = vperm.xlu0 %75, %v26
    %v77 = vpop.permute.xlu0 %76
    %80 = vset.pattern.permute.xlu0 0
    %81 = vperm.xlu0 %80, %v27
    %v82 = vpop.permute.xlu0 %81
    %85 = vset.pattern.permute.xlu0 0
    %86 = vperm.xlu0 %85, %v28
    %v87 = vpop.permute.xlu0 %86
    %90 = vset.pattern.permute.xlu0 0
    %91 = vperm.xlu0 %90, %v29
    %v92 = vpop.permute.xlu0 %91
    %95 = vset.pattern.permute.xlu0 0
    %96 = vperm.xlu0 %95, %v30
    %v97 = vpop.permute.xlu0 %96
    %100 = vset.pattern.permute.xlu0 0
    %101 = vperm.xlu0 %100, %v31
    %v102 = vpop.permute.xlu0 %101
    %105 = vset.pattern.permute.xlu0 0
    %106 = vperm.xlu0 %105, %v32
    %v107 = vpop.permute.xlu0 %106
    %110 = vset.pattern.permute.xlu0 0
    %111 = vperm.xlu0 %110, %v33
    %v112 = vpop.permute.xlu0 %111
    %115 = vset.pattern.permute.xlu0 0
    %116 = vperm.xlu0 %115, %v34
    %v117 = vpop.permute.xlu0 %116
    %120 = vset.pattern.permute.xlu0 0
    %121 = vperm.xlu0 %120, %v35
    %v122 = vpop.permute.xlu0 %121
    %125 = vset.pattern.permute.xlu0 0
    %126 = vperm.xlu0 %125, %v36
    %v127 = vpop.permute.xlu0 %126
    %130 = vset.pattern.permute.xlu0 0
    %131 = vperm.xlu0 %130, %v37
    %v132 = vpop.permute.xlu0 %131
    %v134 = vperm.slane %v21, 0
    %v135 = vmul.f32 %v57, %v134
    %v136 = vmul.f32 %v62, %v134
    %v137 = vmul.f32 %v67, %v134
    %v138 = vmul.f32 %v72, %v134
    %v139 = vmul.f32 %v77, %v134
    %v140 = vmul.f32 %v82, %v134
    %v141 = vmul.f32 %v87, %v134
    %v142 = vmul.f32 %v92, %v134
    %v143 = vmul.f32 %v97, %v134
    %v144 = vmul.f32 %v102, %v134
    %v145 = vmul.f32 %v107, %v134
    %v146 = vmul.f32 %v112, %v134
    %v147 = vmul.f32 %v117, %v134
    %v148 = vmul.f32 %v122, %v134
    %v149 = vmul.f32 %v127, %v134
    %v150 = vmul.f32 %v132, %v134
    %152 = vset.pattern.permute.xlu0 0
    %153 = vperm.xlu0 %152, %v38
    %v154 = vpop.permute.xlu0 %153
    %157 = vset.pattern.permute.xlu0 0
    %158 = vperm.xlu0 %157, %v39
    %v159 = vpop.permute.xlu0 %158
    %162 = vset.pattern.permute.xlu0 0
    %163 = vperm.xlu0 %162, %v40
    %v164 = vpop.permute.xlu0 %163
    %167 = vset.pattern.permute.xlu0 0
    %168 = vperm.xlu0 %167, %v41
    %v169 = vpop.permute.xlu0 %168
    %172 = vset.pattern.permute.xlu0 0
    %173 = vperm.xlu0 %172, %v42
    %v174 = vpop.permute.xlu0 %173
    %177 = vset.pattern.permute.xlu0 0
    %178 = vperm.xlu0 %177, %v43
    %v179 = vpop.permute.xlu0 %178
    %182 = vset.pattern.permute.xlu0 0
    %183 = vperm.xlu0 %182, %v44
    %v184 = vpop.permute.xlu0 %183
    %187 = vset.pattern.permute.xlu0 0
    %188 = vperm.xlu0 %187, %v45
    %v189 = vpop.permute.xlu0 %188
    %192 = vset.pattern.permute.xlu0 0
    %193 = vperm.xlu0 %192, %v46
    %v194 = vpop.permute.xlu0 %193
    %197 = vset.pattern.permute.xlu0 0
    %198 = vperm.xlu0 %197, %v47
    %v199 = vpop.permute.xlu0 %198
    %202 = vset.pattern.permute.xlu0 0
    %203 = vperm.xlu0 %202, %v48
    %v204 = vpop.permute.xlu0 %203
    %207 = vset.pattern.permute.xlu0 0
    %208 = vperm.xlu0 %207, %v49
    %v209 = vpop.permute.xlu0 %208
    %212 = vset.pattern.permute.xlu0 0
    %213 = vperm.xlu0 %212, %v50
    %v214 = vpop.permute.xlu0 %213
    %217 = vset.pattern.permute.xlu0 0
    %218 = vperm.xlu0 %217, %v51
    %v219 = vpop.permute.xlu0 %218
    %222 = vset.pattern.permute.xlu0 0
    %223 = vperm.xlu0 %222, %v52
    %v224 = vpop.permute.xlu0 %223
    %227 = vset.pattern.permute.xlu0 0
    %228 = vperm.xlu0 %227, %v53
    %v229 = vpop.permute.xlu0 %228
    %v231 = vadd.f32 %v154, %v135
    %v232 = vadd.f32 %v159, %v136
    %v233 = vadd.f32 %v164, %v137
    %v234 = vadd.f32 %v169, %v138
    %v235 = vadd.f32 %v174, %v139
    %v236 = vadd.f32 %v179, %v140
    %v237 = vadd.f32 %v184, %v141
    %v238 = vadd.f32 %v189, %v142
    %v239 = vadd.f32 %v194, %v143
    %v240 = vadd.f32 %v199, %v144
    %v241 = vadd.f32 %v204, %v145
    %v242 = vadd.f32 %v209, %v146
    %v243 = vadd.f32 %v214, %v147
    %v244 = vadd.f32 %v219, %v148
    %v245 = vadd.f32 %v224, %v149
    %v246 = vadd.f32 %v229, %v150
    %247 = vset.pattern.permute.xlu0 1
    %248 = vperm.xlu0 %247, %v22
    %v249 = vpop.permute.xlu0 %248
    %251 = vset.pattern.permute.xlu0 1
    %252 = vperm.xlu0 %251, %v23
    %v253 = vpop.permute.xlu0 %252
    %255 = vset.pattern.permute.xlu0 1
    %256 = vperm.xlu0 %255, %v24
    %v257 = vpop.permute.xlu0 %256
    %259 = vset.pattern.permute.xlu0 1
    %260 = vperm.xlu0 %259, %v25
    %v261 = vpop.permute.xlu0 %260
    %263 = vset.pattern.permute.xlu0 1
    %264 = vperm.xlu0 %263, %v26
    %v265 = vpop.permute.xlu0 %264
    %267 = vset.pattern.permute.xlu0 1
    %268 = vperm.xlu0 %267, %v27
    %v269 = vpop.permute.xlu0 %268
    %271 = vset.pattern.permute.xlu0 1
    %272 = vperm.xlu0 %271, %v28
    %v273 = vpop.permute.xlu0 %272
    %275 = vset.pattern.permute.xlu0 1
    %276 = vperm.xlu0 %275, %v29
    %v277 = vpop.permute.xlu0 %276
    %279 = vset.pattern.permute.xlu0 1
    %280 = vperm.xlu0 %279, %v30
    %v281 = vpop.permute.xlu0 %280
    %283 = vset.pattern.permute.xlu0 1
    %284 = vperm.xlu0 %283, %v31
    %v285 = vpop.permute.xlu0 %284
    %287 = vset.pattern.permute.xlu0 1
    %288 = vperm.xlu0 %287, %v32
    %v289 = vpop.permute.xlu0 %288
    %291 = vset.pattern.permute.xlu0 1
    %292 = vperm.xlu0 %291, %v33
    %v293 = vpop.permute.xlu0 %292
    %295 = vset.pattern.permute.xlu0 1
    %296 = vperm.xlu0 %295, %v34
    %v297 = vpop.permute.xlu0 %296
    %299 = vset.pattern.permute.xlu0 1
    %300 = vperm.xlu0 %299, %v35
    %v301 = vpop.permute.xlu0 %300
    %303 = vset.pattern.permute.xlu0 1
    %304 = vperm.xlu0 %303, %v36
    %v305 = vpop.permute.xlu0 %304
    %307 = vset.pattern.permute.xlu0 1
    %308 = vperm.xlu0 %307, %v37
    %v309 = vpop.permute.xlu0 %308
    %v311 = vperm.slane %v21, 1
    %v312 = vmul.f32 %v249, %v311
    %v313 = vmul.f32 %v253, %v311
    %v314 = vmul.f32 %v257, %v311
    %v315 = vmul.f32 %v261, %v311
    %v316 = vmul.f32 %v265, %v311
    %v317 = vmul.f32 %v269, %v311
    %v318 = vmul.f32 %v273, %v311
    %v319 = vmul.f32 %v277, %v311
    %v320 = vmul.f32 %v281, %v311
    %v321 = vmul.f32 %v285, %v311
    %v322 = vmul.f32 %v289, %v311
    %v323 = vmul.f32 %v293, %v311
    %v324 = vmul.f32 %v297, %v311
    %v325 = vmul.f32 %v301, %v311
    %v326 = vmul.f32 %v305, %v311
    %v327 = vmul.f32 %v309, %v311
    %v328 = vadd.f32 %v231, %v312
    %v329 = vadd.f32 %v232, %v313
    %v330 = vadd.f32 %v233, %v314
    %v331 = vadd.f32 %v234, %v315
    %v332 = vadd.f32 %v235, %v316
    %v333 = vadd.f32 %v236, %v317
    %v334 = vadd.f32 %v237, %v318
    %v335 = vadd.f32 %v238, %v319
    %v336 = vadd.f32 %v239, %v320
    %v337 = vadd.f32 %v240, %v321
    %v338 = vadd.f32 %v241, %v322
    %v339 = vadd.f32 %v242, %v323
    %v340 = vadd.f32 %v243, %v324
    %v341 = vadd.f32 %v244, %v325
    %v342 = vadd.f32 %v245, %v326
    %v343 = vadd.f32 %v246, %v327
    %344 = vset.pattern.permute.xlu0 2
    %345 = vperm.xlu0 %344, %v22
    %v346 = vpop.permute.xlu0 %345
    %348 = vset.pattern.permute.xlu0 2
    %349 = vperm.xlu0 %348, %v23
    %v350 = vpop.permute.xlu0 %349
    %352 = vset.pattern.permute.xlu0 2
    %353 = vperm.xlu0 %352, %v24
    %v354 = vpop.permute.xlu0 %353
    %356 = vset.pattern.permute.xlu0 2
    %357 = vperm.xlu0 %356, %v25
    %v358 = vpop.permute.xlu0 %357
    %360 = vset.pattern.permute.xlu0 2
    %361 = vperm.xlu0 %360, %v26
    %v362 = vpop.permute.xlu0 %361
    %364 = vset.pattern.permute.xlu0 2
    %365 = vperm.xlu0 %364, %v27
    %v366 = vpop.permute.xlu0 %365
    %368 = vset.pattern.permute.xlu0 2
    %369 = vperm.xlu0 %368, %v28
    %v370 = vpop.permute.xlu0 %369
    %372 = vset.pattern.permute.xlu0 2
    %373 = vperm.xlu0 %372, %v29
    %v374 = vpop.permute.xlu0 %373
    %376 = vset.pattern.permute.xlu0 2
    %377 = vperm.xlu0 %376, %v30
    %v378 = vpop.permute.xlu0 %377
    %380 = vset.pattern.permute.xlu0 2
    %381 = vperm.xlu0 %380, %v31
    %v382 = vpop.permute.xlu0 %381
    %384 = vset.pattern.permute.xlu0 2
    %385 = vperm.xlu0 %384, %v32
    %v386 = vpop.permute.xlu0 %385
    %388 = vset.pattern.permute.xlu0 2
    %389 = vperm.xlu0 %388, %v33
    %v390 = vpop.permute.xlu0 %389
    %392 = vset.pattern.permute.xlu0 2
    %393 = vperm.xlu0 %392, %v34
    %v394 = vpop.permute.xlu0 %393
    %396 = vset.pattern.permute.xlu0 2
    %397 = vperm.xlu0 %396, %v35
    %v398 = vpop.permute.xlu0 %397
    %400 = vset.pattern.permute.xlu0 2
    %401 = vperm.xlu0 %400, %v36
    %v402 = vpop.permute.xlu0 %401
    %404 = vset.pattern.permute.xlu0 2
    %405 = vperm.xlu0 %404, %v37
    %v406 = vpop.permute.xlu0 %405
    %v408 = vperm.slane %v21, 2
    %v409 = vmul.f32 %v346, %v408
    %v410 = vmul.f32 %v350, %v408
    %v411 = vmul.f32 %v354, %v408
    %v412 = vmul.f32 %v358, %v408
    %v413 = vmul.f32 %v362, %v408
    %v414 = vmul.f32 %v366, %v408
    %v415 = vmul.f32 %v370, %v408
    %v416 = vmul.f32 %v374, %v408
    %v417 = vmul.f32 %v378, %v408
    %v418 = vmul.f32 %v382, %v408
    %v419 = vmul.f32 %v386, %v408
    %v420 = vmul.f32 %v390, %v408
    %v421 = vmul.f32 %v394, %v408
    %v422 = vmul.f32 %v398, %v408
    %v423 = vmul.f32 %v402, %v408
    %v424 = vmul.f32 %v406, %v408
    %v425 = vadd.f32 %v328, %v409
    %v426 = vadd.f32 %v329, %v410
    %v427 = vadd.f32 %v330, %v411
    %v428 = vadd.f32 %v331, %v412
    %v429 = vadd.f32 %v332, %v413
    %v430 = vadd.f32 %v333, %v414
    %v431 = vadd.f32 %v334, %v415
    %v432 = vadd.f32 %v335, %v416
    %v433 = vadd.f32 %v336, %v417
    %v434 = vadd.f32 %v337, %v418
    %v435 = vadd.f32 %v338, %v419
    %v436 = vadd.f32 %v339, %v420
    %v437 = vadd.f32 %v340, %v421
    %v438 = vadd.f32 %v341, %v422
    %v439 = vadd.f32 %v342, %v423
    %v440 = vadd.f32 %v343, %v424
    %v441 = vmax.f32 %v425, 0.0
    %v442 = vmax.f32 %v426, 0.0
    %v443 = vmax.f32 %v427, 0.0
    %v444 = vmax.f32 %v428, 0.0
    %v445 = vmax.f32 %v429, 0.0
    %v446 = vmax.f32 %v430, 0.0
    %v447 = vmax.f32 %v431, 0.0
    %v448 = vmax.f32 %v432, 0.0
    %v449 = vmax.f32 %v433, 0.0
    %v450 = vmax.f32 %v434, 0.0
    %v451 = vmax.f32 %v435, 0.0
    %v452 = vmax.f32 %v436, 0.0
    %v453 = vmax.f32 %v437, 0.0
    %v454 = vmax.f32 %v438, 0.0
    %v455 = vmax.f32 %v439, 0.0
    %v456 = vmax.f32 %v440, 0.0
    %v457 = vld [vmem:[%s3] sm:$0x3]
    %v458 = vld [vmem:[%s4] sm:$0x3]
    %460 = vset.pattern.permute.xlu0 0
    %461 = vperm.xlu0 %460, %v458
    %v462 = vpop.permute.xlu0 %461
    %464 = vmatpush.msra.mxu0 %v456
    %465 = vmatpush.msra.mxu0 %v455
    %466 = vmatpush.msra.mxu0 %v454
    %467 = vmatpush.msra.mxu0 %v453
    %468 = vmatpush.msra.mxu0 %v452
    %469 = vmatpush.msra.mxu0 %v451
    %470 = vmatpush.msra.mxu0 %v450
    %471 = vmatpush.msra.mxu0 %v449
    %472 = vmatpush.msra.mxu0 %v448
    %473 = vmatpush.msra.mxu0 %v447
    %474 = vmatpush.msra.mxu0 %v446
    %475 = vmatpush.msra.mxu0 %v445
    %476 = vmatpush.msra.mxu0 %v444
    %477 = vmatpush.msra.mxu0 %v443
    %478 = vmatpush.msra.mxu0 %v442
    %479 = vmatpush.msra.mxu0 %v441
    %480 = vmatmul.f32.gmra.mxu0 %v457
    %v481 = vpop.f32.mrf.mxu0
    %v482 = vadd.f32 %v462, %v481
    %483 = vdwg.mxu0
    %v484 = vmax.f32 %v482, 0.0
    %v485 = vand.u32 2147483647, %v482
    %v486 = vsub.f32 0.0, %v485
    %v487 = vmul.f32 %v486, 1.442695
    %v488 = vpow.pop %v487
    %v489 = vadd.f32 %v488, 1.0
    %v490 = vlog2.pop %v489
    %v491 = vmul.f32 %v490, 0.6931472
    %v492 = vmul.f32 -0.5, %v488
    %v493 = vadd.f32 %v492, 1.0
    %v494 = vmul.f32 %v493, %v488
    %v495 = vand.u32 2147483647, %v488
    %vm496 = vcmp.lt.f32.partialorder %v495, 0.0004427343
    %v497 = vsel %vm496, %v494, %v491
    %v498 = vadd.f32 %v484, %v497
    %v500 = vrot.slane %v21, 2
    %v502 = vmul.f32 %v498, %v500
    %v504 = vrot.slane %v502, 1
    %v506 = vadd.f32 %v482, %v504
    %v507 = vtanh.pop %v506
    %v508 = vmul.f32 %v507, %v507
    %v509 = vsub.f32 1.0, %v508
    %v510 = vadd.f32 %v509, 1e-07
    %v512 = vrot.slane %v498, 1
    %v515 = vrot.slane %v510, 7
    %vm517 = vcmask 1040384
    %v518 = vsel %vm517, %v512, %v515
    %v519 = vlog2.pop %v518
    %v520 = vmul.f32 %v519, 0.6931472
    %v521 = vmul.f32 %v21, -0.5
    %v522 = vmul.f32 %v521, %v21
    %v524 = vrot.slane %v520, 5
    %v526 = vsub.f32 %v522, %v524
    %v527 = vsub.f32 %v526, 0.9189385
    %v528 = vrot.slane %v520, 6
    %v530 = vsub.f32 %v527, %v528
    %vm531 = vcmask 57344
    %532 = vst.msk [vmem:[#allocation2] sm:$0x1] %vm531, %v507
    %vm533 = vcmask 60419
    %534 = vst.msk [vmem:[#allocation2 - $0x2] sm:$0x8] %vm533, %v530
    // Predicated region
    $region22: #{tpu_custom_call.1} parent=1 // pred_check
      _
    $region23: #{tpu_custom_call.1} parent=1 // pred_check_branch
      %536 = sbr.rel (0) target = $region25
    $region24: #{tpu_custom_call.1} parent=1 // pred_region
      %538 = vsyncadd [#allocation3], 0
      %s540 = sshll.u32 [#allocation2], 4
      %s541 = int_to_ptr.vmem [resolvable:$true] %s540
      %s542 = sshll.u32 %s5, 4
      %s543 = int_to_ptr.hbm [resolvable:$true] %s542
      %545 = dma.vmem_to_hbm [thread:$0]  %s541, 32, %s543, [#allocation3]
    $region25: #{tpu_custom_call.1} parent=1 // pred_fallthru
      _
    // Predicated region
    $region26: #{tpu_custom_call.1} parent=1 // pred_check
      _
    $region27: #{tpu_custom_call.1} parent=1 // pred_check_branch
      %547 = sbr.rel (0) target = $region29
    $region28: #{tpu_custom_call.1} parent=1 // pred_region
      %549 = dma.done [#allocation3], 32
    $region29: #{tpu_custom_call.1} parent=1 // pred_fallthru
      _
    %550 = vsyncpa [#allocation3], 1

</llo_original>
